<compile_context>
chip_gen: v7x
topology: tpu7x:2x2x1
jax: 0.10.0
libtpu: 0.0.40
codegen_flags: <defaults>
</compile_context>

<pallas_src>
import functools

import jax
import jax.numpy as jnp
from jax.experimental import pallas as pl
from jax.experimental.pallas import tpu as pltpu

_MAX_CORES = 2                         # leading parallel axis (v7x megacore)
_BLOCK_BYTE_BUDGET = 4 * 1024 * 1024   # target bytes per input block per buffer


def _loss_kernel(p_ref, y_ref, o_ref, *, tm, bpc, m_rows, need_mask):
    i = pl.program_id(1)

    @pl.when(i == 0)
    def _():
        o_ref[...] = jnp.zeros_like(o_ref)

    # Upcast AFTER the VMEM load so bf16 inputs stream at native width in HBM.
    p0 = p_ref[0].astype(jnp.float32)
    p1 = p_ref[1].astype(jnp.float32)
    y0 = y_ref[0].astype(jnp.float32)
    y1 = y_ref[1].astype(jnp.float32)
    diff = (p0 - p1) - (y0 - y1)

    if need_mask:
        # Zero rows beyond M (tail tile and/or duplicated clamped blocks).
        c = pl.program_id(0)
        row0 = (c * bpc + i) * tm
        rows = row0 + jax.lax.broadcasted_iota(jnp.int32, (tm, 1), 0)
        diff = jnp.where(rows < m_rows, diff, 0.0)

    sq = diff * diff
    # Fold groups of 8 rows into the 8 sublane accumulators: VPU adds between
    # vregs, lanes untouched -- no XLU reduce in the hot loop.
    partial = sq.reshape(tm // 8, 8, sq.shape[-1]).sum(axis=0)
    o_ref[...] += partial[None]


def loss(predict_y, input_y, *, tm=None):
    """Pallas equivalent of Loss.forward. Returns a scalar float32."""
    assert predict_y.shape == input_y.shape
    assert predict_y.shape[0] == 2, "pair axis (index 0 and 1) must be size 2"
    _, M, N = predict_y.shape
    itemsize = predict_y.dtype.itemsize

    if tm is None:
        # Pick the M-tile from a byte budget: block is (2, tm, N) per input.
        rows = _BLOCK_BYTE_BUDGET // (2 * N * itemsize)
        tm = max(8, (rows // 8) * 8)
    m_rounded = ((M + 7) // 8) * 8
    tm = int(min(tm, m_rounded))
    assert tm % 8 == 0

    nblocks = pl.cdiv(M, tm)                     # real M-tiles
    num_cores = min(_MAX_CORES, nblocks)         # don't duplicate tiny inputs
    bpc = pl.cdiv(nblocks, num_cores)            # tiles handled per core
    need_mask = (nblocks * tm != M) or (num_cores * bpc != nblocks)

    def in_map(c, i):
        # Clamp so padded / duplicated blocks never DMA out of bounds; their
        # contribution is zeroed by the row mask inside the kernel.
        return (0, jnp.minimum(c * bpc + i, nblocks - 1), 0)

    kernel = functools.partial(
        _loss_kernel, tm=tm, bpc=bpc, m_rows=M, need_mask=need_mask)

    partials = pl.pallas_call(
        kernel,
        out_shape=jax.ShapeDtypeStruct((num_cores, 8, N), jnp.float32),
        grid_spec=pltpu.PrefetchScalarGridSpec(
            num_scalar_prefetch=0,
            grid=(num_cores, bpc),
            in_specs=[
                pl.BlockSpec((2, tm, N), in_map),
                pl.BlockSpec((2, tm, N), in_map),
            ],
            out_specs=pl.BlockSpec((1, 8, N), lambda c, i: (c, 0, 0)),
        ),
        compiler_params=pltpu.CompilerParams(
            dimension_semantics=("parallel", "arbitrary"),
            # ~16 MiB double-buffered working set; 32 MiB scoped limit is safe
            # on v5e/v6e (128 MiB physical) and v7x (64 MiB physical).
            vmem_limit_bytes=32 * 1024 * 1024,
        ),
    )(predict_y, input_y)

    # Tiny final cross-lane reduction + mean outside the kernel (f32 accum).
    return jnp.sum(partials) / jnp.float32(M * N)


def loss_ref(predict_y, input_y):
    value = predict_y[0] - predict_y[1] - (input_y[0] - input_y[1])
    return jnp.mean(value * value)


if __name__ == "__main__":
    key = jax.random.PRNGKey(0)
    k1, k2, k3, k4 = jax.random.split(key, 4)

    # Case 1: f32 inputs, single tile -> single-core grid, tail-mask path.
    M, N = 16, 128
    predict_y = jax.random.normal(k1, (2, M, N), dtype=jnp.float32)
    input_y = jax.random.normal(k2, (2, M, N), dtype=jnp.float32)
    out = jax.block_until_ready(loss(predict_y, input_y))
    ref = loss_ref(predict_y, input_y)
    assert jnp.allclose(out, ref, rtol=1e-5, atol=1e-5), (out, ref)

    # Case 2: bf16 inputs, multiple grid steps per core (small tm override),
    # exercises the 2-core split with an odd tile count (clamped block + mask).
    M2, N2 = 48, 256
    p2 = jax.random.normal(k3, (2, M2, N2), dtype=jnp.bfloat16)
    y2 = jax.random.normal(k4, (2, M2, N2), dtype=jnp.bfloat16)
    out2 = jax.block_until_ready(loss(p2, y2, tm=8))
    ref2 = loss_ref(p2.astype(jnp.float32), y2.astype(jnp.float32))
    assert jnp.allclose(out2, ref2, rtol=1e-3, atol=1e-3), (out2, ref2)

    print("KERNEL_OK")
</pallas_src>

<mosaic_0001>
module attributes {stable_mosaic.version = 11 : i64} {
  func.func @_loss_kernel(%arg0: i32, %arg1: i32, %arg2: memref<2x16x128xf32, #tpu.memory_space<vmem>>, %arg3: memref<2x16x128xf32, #tpu.memory_space<vmem>>, %arg4: memref<1x8x128xf32, #tpu.memory_space<vmem>>) attributes {dimension_semantics = [#tpu.dimension_semantics<parallel>, #tpu.dimension_semantics<arbitrary>], iteration_bounds = array<i64: 1, 1>, scalar_prefetch = 0 : i64, scratch_operands = 0 : i64, tpu.core_type = #tpu.core_type<tc>, window_params = [{transform_indices = @transform_0, window_bounds = array<i64: 2, 16, 128>}, {transform_indices = @transform_1, window_bounds = array<i64: 2, 16, 128>}, {transform_indices = @transform_2, window_bounds = array<i64: 1, 8, 128>}]} {
    %c0_i32 = arith.constant 0 : i32
    %0 = arith.cmpi eq, %arg1, %c0_i32 : i32
    %1 = arith.extui %0 : i1 to i32
    %c0_i32_0 = arith.constant 0 : i32
    %2 = arith.cmpi ne, %1, %c0_i32_0 : i32
    scf.if %2 {
      %cst_17 = arith.constant 0.000000e+00 : f32
      %21 = vector.broadcast %cst_17 : f32 to vector<1x8x128xf32>
      %c0_18 = arith.constant 0 : index
      %c0_19 = arith.constant 0 : index
      %c0_20 = arith.constant 0 : index
      %22 = vector.load %arg4[%c0_18, %c0_19, %c0_20] : memref<1x8x128xf32, #tpu.memory_space<vmem>>, vector<1x8x128xf32>
      tpu.vector_store %arg4[%c0_18, %c0_19, %c0_20], %21 {strides = array<i32>} : memref<1x8x128xf32, #tpu.memory_space<vmem>>, vector<1x8x128xf32>,
    } else {
    }
    %c0 = arith.constant 0 : index
    %c0_1 = arith.constant 0 : index
    %c0_2 = arith.constant 0 : index
    %3 = vector.load %arg2[%c0, %c0_1, %c0_2] : memref<2x16x128xf32, #tpu.memory_space<vmem>>, vector<1x16x128xf32>
    %4 = vector.shape_cast %3 : vector<1x16x128xf32> to vector<16x128xf32>
    %c1 = arith.constant 1 : index
    %c0_3 = arith.constant 0 : index
    %c0_4 = arith.constant 0 : index
    %5 = vector.load %arg2[%c1, %c0_3, %c0_4] : memref<2x16x128xf32, #tpu.memory_space<vmem>>, vector<1x16x128xf32>
    %6 = vector.shape_cast %5 : vector<1x16x128xf32> to vector<16x128xf32>
    %c0_5 = arith.constant 0 : index
    %c0_6 = arith.constant 0 : index
    %c0_7 = arith.constant 0 : index
    %7 = vector.load %arg3[%c0_5, %c0_6, %c0_7] : memref<2x16x128xf32, #tpu.memory_space<vmem>>, vector<1x16x128xf32>
    %8 = vector.shape_cast %7 : vector<1x16x128xf32> to vector<16x128xf32>
    %c1_8 = arith.constant 1 : index
    %c0_9 = arith.constant 0 : index
    %c0_10 = arith.constant 0 : index
    %9 = vector.load %arg3[%c1_8, %c0_9, %c0_10] : memref<2x16x128xf32, #tpu.memory_space<vmem>>, vector<1x16x128xf32>
    %10 = vector.shape_cast %9 : vector<1x16x128xf32> to vector<16x128xf32>
    %11 = arith.subf %4, %6 : vector<16x128xf32>
    %12 = arith.subf %8, %10 : vector<16x128xf32>
    %13 = arith.subf %11, %12 : vector<16x128xf32>
    %14 = arith.mulf %13, %13 : vector<16x128xf32>
    %15 = vector.shape_cast %14 : vector<16x128xf32> to vector<2x8x128xf32>
    %cst = arith.constant dense<0.000000e+00> : vector<8x128xf32>
    %16 = vector.multi_reduction <add>, %15, %cst [0] : vector<2x8x128xf32> to vector<8x128xf32>
    %c0_11 = arith.constant 0 : index
    %c0_12 = arith.constant 0 : index
    %c0_13 = arith.constant 0 : index
    %17 = vector.load %arg4[%c0_11, %c0_12, %c0_13] : memref<1x8x128xf32, #tpu.memory_space<vmem>>, vector<1x8x128xf32>
    %18 = vector.shape_cast %16 : vector<8x128xf32> to vector<1x8x128xf32>
    %19 = arith.addf %17, %18 : vector<1x8x128xf32>
    %c0_14 = arith.constant 0 : index
    %c0_15 = arith.constant 0 : index
    %c0_16 = arith.constant 0 : index
    %20 = vector.load %arg4[%c0_14, %c0_15, %c0_16] : memref<1x8x128xf32, #tpu.memory_space<vmem>>, vector<1x8x128xf32>
    tpu.vector_store %arg4[%c0_14, %c0_15, %c0_16], %19 {strides = array<i32>} : memref<1x8x128xf32, #tpu.memory_space<vmem>>, vector<1x8x128xf32>,
    return
  }
  func.func @transform_0(%arg0: i32, %arg1: i32) -> (i32, i32, i32) {
    %c1_i32 = arith.constant 1 : i32
    %0 = arith.muli %arg0, %c1_i32 : i32
    %1 = arith.addi %0, %arg1 : i32
    %c0_i32 = arith.constant 0 : i32
    %2 = arith.minsi %1, %c0_i32 : i32
    %c0_i32_0 = arith.constant 0 : i32
    %c0_i32_1 = arith.constant 0 : i32
    %c0_i32_2 = arith.constant 0 : i32
    return %c0_i32_0, %2, %c0_i32_1 : i32, i32, i32
  }
  func.func @transform_1(%arg0: i32, %arg1: i32) -> (i32, i32, i32) {
    %c1_i32 = arith.constant 1 : i32
    %0 = arith.muli %arg0, %c1_i32 : i32
    %1 = arith.addi %0, %arg1 : i32
    %c0_i32 = arith.constant 0 : i32
    %2 = arith.minsi %1, %c0_i32 : i32
    %c0_i32_0 = arith.constant 0 : i32
    %c0_i32_1 = arith.constant 0 : i32
    %c0_i32_2 = arith.constant 0 : i32
    return %c0_i32_0, %2, %c0_i32_1 : i32, i32, i32
  }
  func.func @transform_2(%arg0: i32, %arg1: i32) -> (i32, i32, i32) {
    %c0_i32 = arith.constant 0 : i32
    %c0_i32_0 = arith.constant 0 : i32
    %c0_i32_1 = arith.constant 0 : i32
    return %arg0, %c0_i32, %c0_i32_0 : i32, i32, i32
  }
}

</mosaic_0001>

<llo_original>
// kernel: tpu_custom_call.1
$region0: #{tpu_custom_call.1}
  #allocation0 [shape = 'u32[]', space=smem, size = 0x4, offset = 0x4, fixed_abs, tag = 'smem constant byte address 0x4 - core index']
  #allocation1 [shape = 'u32[144,128]{1,0:T(1,128)}', space=vmem, size = 0x12000, scoped, tag = 'internal scratch']
  %s0 = inlined_call_operand.hbm [shape: f32[2,16,128], index: 0, kind: input, shape index: {}]
  %s1 = inlined_call_operand.hbm [shape: f32[2,16,128], index: 1, kind: input, shape index: {}]
  %s2 = inlined_call_operand.hbm [shape: f32[1,8,128], index: 2, kind: output, shape index: {}]
  %s3 = sld [smem:[#allocation0]]
  $region30: #{tpu_custom_call.1} parent=0
    _
  %s5 = ssub.s32 1, %s3
  %s6 = scalar_select 0, %s5, %s3
  $region1: #{tpu_custom_call.1} parent=0
    #allocation2 [shape = 'u8[16384]{0}', space=vmem, size = 0x4000, scoped, tag = 'input window, operand 0, single buffered']
    #allocation3 [shape = 's32[1]{0}', space=sflag, size = 0x4, scoped, tag = 'scoped memory for tpu_custom_call.1']
    #allocation4 [shape = 's32[1]{0}', space=sflag, size = 0x4, scoped, tag = 'scoped memory for tpu_custom_call.1']
    #allocation5 [shape = 'u8[16384]{0}', space=vmem, size = 0x4000, scoped, tag = 'input window, operand 1, single buffered']
    #allocation6 [shape = 's32[1]{0}', space=sflag, size = 0x4, scoped, tag = 'scoped memory for tpu_custom_call.1']
    #allocation7 [shape = 'u8[4096]{0}', space=vmem, size = 0x1000, scoped, tag = 'output window, operand 0, single buffered']
    %7 = vsyncpa [#allocation3], 0
    %8 = vsyncpa [#allocation6], 0
    %9 = vsyncpa [#allocation4], 0
    // Predicated region
    $region2: #{tpu_custom_call.1} parent=1 // pred_check
      _
    $region3: #{tpu_custom_call.1} parent=1 // pred_check_branch
      %11 = sbr.rel (0) target = $region5
    $region4: #{tpu_custom_call.1} parent=1 // pred_region
      %s12 = sadd.s32 0, 0
      %p13 = scmp.lt.s32.totalorder %s12, 0
      %s14 = scalar_select %p13, %s12, 0
      %s15 = smul.u32 2, %s14
      %s17 = ssub.s32 512, 512
      %18 = vsyncadd [#allocation3], %s17
      %s19 = smul.addr %s15, 128
      %s20 = scalar_lea.hbm %s0, %s19
      %s21 = sshll.u32 [#allocation2], 4
      %s22 = int_to_ptr.vmem [resolvable:$true] %s21
      %27 = dma.hbm_to_vmem [thread:$0]  %s20, 512, %s22, [#allocation3], 128, 128, 8
    $region5: #{tpu_custom_call.1} parent=1 // pred_fallthru
      _
    // Predicated region
    $region6: #{tpu_custom_call.1} parent=1 // pred_check
      _
    $region7: #{tpu_custom_call.1} parent=1 // pred_check_branch
      %29 = sbr.rel (0) target = $region9
    $region8: #{tpu_custom_call.1} parent=1 // pred_region
      %s30 = sadd.s32 0, 0
      %p31 = scmp.lt.s32.totalorder %s30, 0
      %s32 = scalar_select %p31, %s30, 0
      %s33 = smul.u32 2, %s32
      %s35 = ssub.s32 512, 512
      %36 = vsyncadd [#allocation6], %s35
      %s37 = smul.addr %s33, 128
      %s38 = scalar_lea.hbm %s1, %s37
      %s39 = sshll.u32 [#allocation5], 4
      %s40 = int_to_ptr.vmem [resolvable:$true] %s39
      %45 = dma.hbm_to_vmem [thread:$0]  %s38, 512, %s40, [#allocation6], 128, 128, 8
    $region9: #{tpu_custom_call.1} parent=1 // pred_fallthru
      _
    // Predicated region
    $region10: #{tpu_custom_call.1} parent=1 // pred_check
      _
    $region11: #{tpu_custom_call.1} parent=1 // pred_check_branch
      %47 = sbr.rel (0) target = $region13
    $region12: #{tpu_custom_call.1} parent=1 // pred_region
      %48 = dma.done [#allocation3], 512
    $region13: #{tpu_custom_call.1} parent=1 // pred_fallthru
      _
    // Predicated region
    $region14: #{tpu_custom_call.1} parent=1 // pred_check
      _
    $region15: #{tpu_custom_call.1} parent=1 // pred_check_branch
      %50 = sbr.rel (0) target = $region17
    $region16: #{tpu_custom_call.1} parent=1 // pred_region
      %51 = dma.done [#allocation6], 512
    $region17: #{tpu_custom_call.1} parent=1 // pred_fallthru
      _
    %s52 = sadd.s32 0, 0
    %p53 = scmp.lt.s32.totalorder %s52, 0
    %s54 = scalar_select %p53, %s52, 0
    %s55 = smul.u32 2, %s54
    %s56 = sadd.s32 0, 0
    %p57 = scmp.lt.s32.totalorder %s56, 0
    %s58 = scalar_select %p57, %s56, 0
    %s59 = smul.u32 2, %s58
    %p60 = scmp.eq.s32.totalorder 0, 0
    // Predicated region
    $region18: #{tpu_custom_call.1} parent=1 // pred_check
      %p61 = pneg %p60
    $region19: #{tpu_custom_call.1} parent=1 // pred_check_branch
      %63 = sbr.rel (%p61) target = $region21
    $region20: #{tpu_custom_call.1} parent=1 // pred_region
      %64 = vst [vmem:[#allocation7] sm:$0xff] 0.0
    $region21: #{tpu_custom_call.1} parent=1 // pred_fallthru
      _
    %v65 = vld [vmem:[#allocation2] sm:$0xff]
    %v66 = vld [vmem:[#allocation2 + $0x8] sm:$0xff]
    %s67 = scalar_lea.vmem [#allocation2], 16
    %v68 = vld [vmem:[%s67] sm:$0xff]
    %v69 = vld [vmem:[%s67 + $0x8] sm:$0xff]
    %v70 = vld [vmem:[#allocation5] sm:$0xff]
    %v71 = vld [vmem:[#allocation5 + $0x8] sm:$0xff]
    %s72 = scalar_lea.vmem [#allocation5], 16
    %v73 = vld [vmem:[%s72] sm:$0xff]
    %v74 = vld [vmem:[%s72 + $0x8] sm:$0xff]
    %v75 = vsub.f32 %v65, %v68
    %v76 = vsub.f32 %v66, %v69
    %v77 = vsub.f32 %v70, %v73
    %v78 = vsub.f32 %v71, %v74
    %v79 = vsub.f32 %v75, %v77
    %v80 = vsub.f32 %v76, %v78
    %v81 = vmul.f32 %v79, %v79
    %v82 = vmul.f32 %v80, %v80
    %v83 = vadd.f32 %v81, %v82
    %v84 = vld [vmem:[#allocation7] sm:$0xff]
    %v85 = vadd.f32 %v84, %v83
    %86 = vst [vmem:[#allocation7] sm:$0xff] %v85
    // Predicated region
    $region22: #{tpu_custom_call.1} parent=1 // pred_check
      _
    $region23: #{tpu_custom_call.1} parent=1 // pred_check_branch
      %88 = sbr.rel (0) target = $region25
    $region24: #{tpu_custom_call.1} parent=1 // pred_region
      %s90 = ssub.s32 128, 128
      %91 = vsyncadd [#allocation4], %s90
      %s93 = sshll.u32 [#allocation7], 4
      %s94 = int_to_ptr.vmem [resolvable:$true] %s93
      %96 = dma.vmem_to_hbm [thread:$0]  %s94, 128, %s2, [#allocation4]
    $region25: #{tpu_custom_call.1} parent=1 // pred_fallthru
      _
    // Predicated region
    $region26: #{tpu_custom_call.1} parent=1 // pred_check
      _
    $region27: #{tpu_custom_call.1} parent=1 // pred_check_branch
      %98 = sbr.rel (0) target = $region29
    $region28: #{tpu_custom_call.1} parent=1 // pred_region
      %99 = dma.done [#allocation4], 128
    $region29: #{tpu_custom_call.1} parent=1 // pred_fallthru
      _
    %100 = vsyncpa [#allocation3], 1
    %101 = vsyncpa [#allocation6], 1
    %102 = vsyncpa [#allocation4], 1

</llo_original>
